<compile_context>
chip_gen: v5e
topology: v5e:2x2
jax: 0.10.0
libtpu: 0.0.40
codegen_flags: <defaults>
</compile_context>

<pallas_src>
import functools

import jax
import jax.numpy as jnp
from jax import lax
from jax.experimental import pallas as pl
from jax.experimental.pallas import tpu as pltpu

_SUBLANE = 8
# Keep every call's working set under the default scoped-VMEM limit of all
# generations (v5e: 16 MiB, v6e: 32 MiB, v7x: 32 MiB scoped / 64 MiB physical).
_VMEM_BUDGET = 12 * 1024 * 1024
# Below this total footprint: whole problem in VMEM, no grid, no pipeline.
_GRIDLESS_BYTES = 2 * 1024 * 1024


def _round_up(x, m):
    return (x + m - 1) // m * m


def _linear_kernel(x_ref, w_ref, b_ref, o_ref):
    # x_ref: (TB, D) f32 | w_ref: (D, C) bf16/f32 (pre-transposed, resident)
    # b_ref: (1, C) f32  | o_ref: (TB, C) f32 (narrow: only real classes)
    x = x_ref[...].astype(w_ref.dtype)       # in-kernel cast: no extra HBM pass
    acc = jnp.dot(x, w_ref[...], preferred_element_type=jnp.float32)
    o_ref[...] = (acc + b_ref[...]).astype(o_ref.dtype)


def _predict_kernel(x_ref, w_ref, b_ref, o_ref):
    # Fused linear + argmax; o_ref: (TB, 1) int32 -> 4 B/row writeback.
    x = x_ref[...].astype(w_ref.dtype)
    logits = jnp.dot(x, w_ref[...], preferred_element_type=jnp.float32) + b_ref[...]
    # No padded class lanes exist (weight kept at true (D, C) width), so no
    # -inf masking is needed.  argmax = min index where value == row max.
    col = lax.broadcasted_iota(jnp.float32, logits.shape, 1)
    row_max = jnp.max(logits, axis=-1, keepdims=True)
    cand = jnp.where(logits == row_max, col, jnp.float32(1e30))
    o_ref[...] = jnp.min(cand, axis=-1, keepdims=True).astype(jnp.int32)


def _pick_batch_tile(B, D, C, out_cols, x_bytes, w_bytes):
    """Largest batch tile whose double-buffered blocks fit the VMEM budget,
    capped so the grid has >= 2 tiles (keeps both v7x TensorCores busy)."""
    resident = D * C * w_bytes + C * 4            # weight + bias stay resident
    per_row = 2 * (D * x_bytes + out_cols * 4)    # 2x: double-buffered in/out
    tb = max(_SUBLANE, (_VMEM_BUDGET - resident) // per_row)
    tb = min(tb, 4096)                            # amortize ~0.35us/step overhead
    if B >= 2 * _SUBLANE:                         # guarantee >= 2 grid tiles
        tb = min(tb, _round_up(pl.cdiv(B, 2), _SUBLANE))
    return int(_round_up(min(tb, B), _SUBLANE))


def _run(kernel, x, w_t, b_row, out_cols, out_dtype):
    B, D = x.shape
    C = w_t.shape[1]
    x_bytes = x.dtype.itemsize
    w_bytes = w_t.dtype.itemsize
    out_bytes = 4  # f32 logits or int32 argmax
    out_shape = jax.ShapeDtypeStruct((B, out_cols), out_dtype)

    footprint = (B * D * x_bytes + B * out_cols * out_bytes
                 + D * C * w_bytes + C * 4)
    if footprint <= _GRIDLESS_BYTES:
        # Small problem: everything VMEM-resident, no grid / pipeline prologue.
        vmem = pl.BlockSpec(memory_space=pltpu.MemorySpace.VMEM)
        return pl.pallas_call(
            kernel,
            out_shape=out_shape,
            in_specs=[vmem, vmem, vmem],
            out_specs=vmem,
        )(x, w_t, b_row)

    tb = _pick_batch_tile(B, D, C, out_cols, x_bytes, w_bytes)
    grid = (pl.cdiv(B, tb),)   # ragged last block: Pallas masks the writeback
    return pl.pallas_call(
        kernel,
        out_shape=out_shape,
        grid=grid,
        in_specs=[
            pl.BlockSpec((tb, D), lambda i: (i, 0)),   # batch-tiled f32 x
            pl.BlockSpec((D, C), lambda i: (0, 0)),    # resident weight (D, C)
            pl.BlockSpec((1, C), lambda i: (0, 0)),    # resident bias
        ],
        out_specs=pl.BlockSpec((tb, out_cols), lambda i: (i, 0)),
        compiler_params=pltpu.CompilerParams(
            dimension_semantics=("parallel",),
        ),
    )(x, w_t, b_row)


@functools.partial(jax.jit, static_argnames=("use_bf16",))
def logistic_regression_forward(x, weight, bias, *, use_bf16=True):
    """x: (B, D) f32, weight: (C, D) f32 (torch layout), bias: (C,) -> (B, C) f32.

    use_bf16=True runs the MXU contraction in bf16 with f32 accumulation
    (~1e-2 relative vs the f32 reference); set False for full-f32 compute.
    """
    compute_dtype = jnp.bfloat16 if use_bf16 else jnp.float32
    w_t = weight.T.astype(compute_dtype)               # one-time tiny transpose/cast
    b_row = bias.astype(jnp.float32).reshape(1, -1)
    return _run(_linear_kernel, x, w_t, b_row,
                out_cols=w_t.shape[1], out_dtype=jnp.float32)


@functools.partial(jax.jit, static_argnames=("use_bf16",))
def predict(x, weight, bias, *, use_bf16=True):
    # softmax is monotone -> argmax(softmax(logits)) == argmax(logits); the
    # argmax is fused into the kernel so only 4 B/row is written back.
    compute_dtype = jnp.bfloat16 if use_bf16 else jnp.float32
    w_t = weight.T.astype(compute_dtype)
    b_row = bias.astype(jnp.float32).reshape(1, -1)
    out = _run(_predict_kernel, x, w_t, b_row, out_cols=1, out_dtype=jnp.int32)
    return out[:, 0]


if __name__ == "__main__":
    # Module config: input_dim=32, num_classes=8; batch=8.
    input_dim, num_classes, batch = 32, 8, 8

    key = jax.random.PRNGKey(0)
    kx, kw, kb, kx2 = jax.random.split(key, 4)

    # nn.Linear-style uniform init with bound 1/sqrt(fan_in).
    bound = 1.0 / (input_dim ** 0.5)
    weight = jax.random.uniform(kw, (num_classes, input_dim),
                                minval=-bound, maxval=bound, dtype=jnp.float32)
    bias = jax.random.uniform(kb, (num_classes,),
                              minval=-bound, maxval=bound, dtype=jnp.float32)
    x = jax.random.normal(kx, (batch, input_dim), dtype=jnp.float32)

    # --- small-batch (gridless, VMEM-resident) path ---
    logits = jax.block_until_ready(logistic_regression_forward(x, weight, bias))
    assert logits.shape == (batch, num_classes)

    # Matched-precision reference (bf16 operands, f32 accumulation).
    ref_bf16 = jnp.dot(x.astype(jnp.bfloat16), weight.astype(jnp.bfloat16).T,
                       preferred_element_type=jnp.float32) + bias
    assert jnp.allclose(logits, ref_bf16, atol=1e-4, rtol=1e-4)
    # Loose sanity check against the f32 reference (bf16 rounding only).
    ref_f32 = x @ weight.T + bias
    assert jnp.allclose(logits, ref_f32, atol=2e-2, rtol=2e-2)

    # f32 compute mode (use_bf16=False) against the f32 reference.
    logits_f32 = jax.block_until_ready(
        logistic_regression_forward(x, weight, bias, use_bf16=False))
    assert jnp.allclose(logits_f32, ref_f32, atol=1e-3, rtol=1e-3)

    # Fused argmax predict.
    preds = jax.block_until_ready(predict(x, weight, bias))
    assert preds.shape == (batch,)
    assert jnp.array_equal(preds, jnp.argmax(logits, axis=1))

    # --- large-batch (grid) path: tiled batch, resident weights, parallel axis ---
    big_batch = 16384
    xb = jax.random.normal(kx2, (big_batch, input_dim), dtype=jnp.float32)
    logits_b = jax.block_until_ready(logistic_regression_forward(xb, weight, bias))
    ref_b = jnp.dot(xb.astype(jnp.bfloat16), weight.astype(jnp.bfloat16).T,
                    preferred_element_type=jnp.float32) + bias
    assert logits_b.shape == (big_batch, num_classes)
    assert jnp.allclose(logits_b, ref_b, atol=1e-4, rtol=1e-4)

    preds_b = jax.block_until_ready(predict(xb, weight, bias))
    assert preds_b.shape == (big_batch,)
    assert jnp.array_equal(preds_b, jnp.argmax(logits_b, axis=1))

    print("KERNEL_OK")
</pallas_src>

<mosaic_0001>
module attributes {stable_mosaic.version = 11 : i64} {
  func.func @_linear_kernel(%arg0: memref<8x32xf32, #tpu.memory_space<vmem>>, %arg1: memref<32x8xbf16, #tpu.memory_space<vmem>>, %arg2: memref<1x8xf32, #tpu.memory_space<vmem>>, %arg3: memref<8x8xf32, #tpu.memory_space<vmem>>) attributes {dimension_semantics = [], scalar_prefetch = 0 : i64, scratch_operands = 0 : i64, tpu.core_type = #tpu.core_type<tc>} {
    %c0 = arith.constant 0 : index
    %c0_0 = arith.constant 0 : index
    %0 = vector.load %arg0[%c0, %c0_0] : memref<8x32xf32, #tpu.memory_space<vmem>>, vector<8x32xf32>
    %1 = arith.truncf %0 : vector<8x32xf32> to vector<8x32xbf16>
    %c0_1 = arith.constant 0 : index
    %c0_2 = arith.constant 0 : index
    %2 = vector.load %arg1[%c0_1, %c0_2] : memref<32x8xbf16, #tpu.memory_space<vmem>>, vector<32x8xbf16>
    %cst = arith.constant dense<0.000000e+00> : vector<8x8xf32>
    %3 = tpu.matmul %1, %2, %cst {dimension_numbers = #tpu.dot_dimension_numbers<[1], [0], [0], [1], [0, 0, 1, 1], [], []>} : vector<8x32xbf16>, vector<32x8xbf16>, vector<8x8xf32> -> vector<8x8xf32>
    %c0_3 = arith.constant 0 : index
    %c0_4 = arith.constant 0 : index
    %4 = vector.load %arg2[%c0_3, %c0_4] : memref<1x8xf32, #tpu.memory_space<vmem>>, vector<1x8xf32>
    %5 = vector.broadcast %4 : vector<1x8xf32> to vector<8x8xf32>
    %6 = arith.addf %3, %5 : vector<8x8xf32>
    %c0_5 = arith.constant 0 : index
    %c0_6 = arith.constant 0 : index
    %7 = vector.load %arg3[%c0_5, %c0_6] : memref<8x8xf32, #tpu.memory_space<vmem>>, vector<8x8xf32>
    tpu.vector_store %arg3[%c0_5, %c0_6], %6 {strides = array<i32>} : memref<8x8xf32, #tpu.memory_space<vmem>>, vector<8x8xf32>,
    return
  }
}

</mosaic_0001>

<llo_original>
// kernel: logistic_regression_forward.1
$region0: #{logistic_regression_forward.1}
  #allocation0 [shape = 'u32[]', space=smem, size = 0x4, offset = 0x4, fixed_abs, tag = 'smem constant byte address 0x4 - core index']
  #allocation1 [shape = 'u32[72,128]{1,0:T(1,128)}', space=vmem, size = 0x9000, scoped, tag = 'internal scratch']
  %s0 = inlined_call_operand.vmem [shape: f32[8,32], index: 0, kind: input, shape index: {}]
  %s1 = inlined_call_operand.vmem [shape: bf16[32,8], index: 1, kind: input, shape index: {}]
  %s2 = inlined_call_operand.vmem [shape: f32[1,8], index: 2, kind: input, shape index: {}]
  %s3 = inlined_call_operand.hbm [shape: f32[8,8], index: 3, kind: output, shape index: {}]
  %s4 = sld [smem:[#allocation0]]
  $region22: #{logistic_regression_forward.1} parent=0
    _
  %s6 = ssub.s32 1, %s4
  %s7 = scalar_select 0, %s6, %s4
  $region1: #{logistic_regression_forward.1} parent=0
    #allocation2 [shape = 'u8[4096]{0}', space=vmem, size = 0x1000, scoped, tag = 'output window, operand 0, single buffered']
    #allocation3 [shape = 's32[1]{0}', space=sflag, size = 0x4, scoped, tag = 'scoped memory for logistic_regression_forward.1']
    %8 = vsyncpa [#allocation3], 0
    // Predicated region
    $region2: #{logistic_regression_forward.1} parent=1 // pred_check
      _
    $region3: #{logistic_regression_forward.1} parent=1 // pred_check_branch
      %10 = sbr.rel (0) target = $region5
    $region4: #{logistic_regression_forward.1} parent=1 // pred_region
      _
    $region5: #{logistic_regression_forward.1} parent=1 // pred_fallthru
      _
    // Predicated region
    $region6: #{logistic_regression_forward.1} parent=1 // pred_check
      _
    $region7: #{logistic_regression_forward.1} parent=1 // pred_check_branch
      %12 = sbr.rel (0) target = $region9
    $region8: #{logistic_regression_forward.1} parent=1 // pred_region
      _
    $region9: #{logistic_regression_forward.1} parent=1 // pred_fallthru
      _
    // Predicated region
    $region10: #{logistic_regression_forward.1} parent=1 // pred_check
      _
    $region11: #{logistic_regression_forward.1} parent=1 // pred_check_branch
      %14 = sbr.rel (0) target = $region13
    $region12: #{logistic_regression_forward.1} parent=1 // pred_region
      _
    $region13: #{logistic_regression_forward.1} parent=1 // pred_fallthru
      _
    %v16 = vld [vmem:[%s0] sm:$0xff]
    %v17 = vpack.c.bf16 %v16, %v16
    %v18 = vld [vmem:[%s1] sm:$0xf]
    %v19 = vld [vmem:[%s1 + $0x4] sm:$0xf]
    %v20 = vld [vmem:[%s1 + $0x8] sm:$0xf]
    %v21 = vld [vmem:[%s1 + $0xc] sm:$0xf]
    %v22 = vld [vmem:[%s2] sm:$0x1]
    %v24 = vperm.slane %v22, 0
    %v30 = vunpack.c.l.b16 %v18
    %v31 = vunpack.c.l.b16 %v19
    %v32 = vunpack.c.l.b16 %v20
    %v33 = vunpack.c.l.b16 %v21
    %v34 = vpack.c.b16 %v31, %v30
    %v35 = vpack.c.b16 %v33, %v32
    %vm38 = vcmask 261120
    %v40 = vsel %vm38, %v17, 0
    %42 = vmatpush.bf16.msra.mxu0 0
    %43 = vmatpush.bf16.msra.mxu0 0
    %44 = vmatpush.bf16.msra.mxu0 0
    %45 = vmatpush.bf16.msra.mxu0 0
    %46 = vmatpush.bf16.msra.mxu0 0
    %47 = vmatpush.bf16.msra.mxu0 0
    %48 = vmatpush.bf16.msra.mxu0 %v35
    %49 = vmatpush.bf16.msra.mxu0 %v34
    %50 = vmatmul.bf16.gmra.mxu0 %v40
    %v51 = vpop.f32.mrf.mxu0
    %v52 = vadd.f32 %v24, %v51
    %v53 = vpop.f32.mrf.mxu0
    %54 = vdwg.mxu0
    %vm55 = vcmask 64512
    %56 = vst.msk [vmem:[#allocation2] sm:$0xff] %vm55, %v52
    // Predicated region
    $region14: #{logistic_regression_forward.1} parent=1 // pred_check
      _
    $region15: #{logistic_regression_forward.1} parent=1 // pred_check_branch
      %58 = sbr.rel (0) target = $region17
    $region16: #{logistic_regression_forward.1} parent=1 // pred_region
      %60 = vsyncadd [#allocation3], 0
      %s62 = sshll.u32 [#allocation2], 4
      %s63 = int_to_ptr.vmem [resolvable:$true] %s62
      %s64 = sshll.u32 %s3, 4
      %s65 = int_to_ptr.hbm [resolvable:$true] %s64
      %67 = dma.vmem_to_hbm [thread:$0]  %s63, 128, %s65, [#allocation3]
    $region17: #{logistic_regression_forward.1} parent=1 // pred_fallthru
      _
    // Predicated region
    $region18: #{logistic_regression_forward.1} parent=1 // pred_check
      _
    $region19: #{logistic_regression_forward.1} parent=1 // pred_check_branch
      %69 = sbr.rel (0) target = $region21
    $region20: #{logistic_regression_forward.1} parent=1 // pred_region
      %71 = dma.done [#allocation3], 128
    $region21: #{logistic_regression_forward.1} parent=1 // pred_fallthru
      _
    %72 = vsyncpa [#allocation3], 1

</llo_original>
